<compile_context>
chip_gen: v7x
topology: tpu7x:2x2x1
jax: 0.10.0
libtpu: 0.0.40
codegen_flags: <defaults>
</compile_context>

<pallas_src>
import functools

import numpy as np
import jax
import jax.numpy as jnp
from jax import lax
from jax.experimental import pallas as pl
from jax.experimental.pallas import tpu as pltpu

BN_EPS = 1e-5  # nn.BatchNorm2d default


def band_weights_fused(w_oihw, W):
    """OIHW 3x3 conv weights -> fused (3*W*Cin, W*Cout) row-band RHS.

    Rows [ky*W*Cin : (ky+1)*W*Cin] hold A(ky), with
        A(ky)[w_in*Cin + ci, w_out*Cout + co] = w[co, ci, ky, kx],  w_in = w_out + kx - 1
    (zero outside the band), so that for row-slab inputs
        out_row(h) = concat_ky( in_row(h + ky - 1) ) @ RHS
    is exactly the stride-1, pad-1 3x3 convolution.  W-direction zero padding is
    implicit in the band; H-direction padding is handled by the zeroed shifted
    rows inside the kernel.
    """
    Cout, Cin, KH, KW = w_oihw.shape
    assert KH == 3 and KW == 3
    taps = jnp.transpose(w_oihw, (2, 3, 1, 0)).astype(jnp.float32)  # (ky, kx, Cin, Cout)
    mats = []
    for ky in range(3):
        a = jnp.zeros((W * Cin, W * Cout), jnp.float32)
        for kx in range(3):
            # shift[w_in, w_out] = 1  iff  w_out = w_in + (1 - kx)
            shift = jnp.eye(W, k=1 - kx, dtype=jnp.float32)
            # kron block layout: rows = w_in*Cin + ci, cols = w_out*Cout + co
            a = a + jnp.kron(shift, taps[ky, kx])
        mats.append(a)
    return jnp.concatenate(mats, axis=0)  # (3*W*Cin, W*Cout)


def preact_block_kernel(x_ref, a1_ref, a2_ref, o_ref, *, N, H, W, C):
    # x_ref  : (N*H, W*C)      f32   input rows, channels minor inside a row
    # a1_ref : (3*W*C, W*C)    bf16  fused band weights for conv1
    # a2_ref : (3*W*C, W*C)    bf16  fused band weights for conv2
    # o_ref  : (N*H, W*C)      f32   output rows
    NH = N * H
    WC = W * C
    inv_cnt = 1.0 / float(N * H * W)
    log2w = W.bit_length() - 1  # W is a power of two (asserted in the wrapper)

    x = x_ref[...]

    def bn_relu(t):
        # Single-pass batch statistics (biased variance, PyTorch training mode).
        # Sum and sum-of-squares stacked into one (2, WC) slab so the lane
        # reduce/broadcast butterfly processes both at once.
        stats = jnp.concatenate(
            [jnp.sum(t, axis=0, keepdims=True),
             jnp.sum(t * t, axis=0, keepdims=True)], axis=0)          # (2, WC)
        # Per-channel lane reduce + broadcast: lanes with equal (lane % C) share
        # a channel, so a log2(W)-step roll-add butterfly leaves every lane
        # holding its channel's total.  Runs on the XLU (idle slot), no MXU.
        for k in range(log2w):
            stats = stats + pltpu.roll(stats, shift=C * (1 << k), axis=1)
        stats = stats * inv_cnt
        mean = stats[0:1, :]                                           # (1, WC)
        var = stats[1:2, :] - mean * mean
        inv_std = lax.rsqrt(var + BN_EPS)
        return jnp.maximum((t - mean) * inv_std, 0.0)                  # bcast rows

    def conv3x3(h, a_ref):
        # One bf16 cast; build the im2col row triple by value-level row shifts
        # (zero rows supply the H-direction padding), then a single K=3*WC dot.
        h16 = h.astype(jnp.bfloat16).reshape(N, H, WC)
        z = jnp.zeros((N, 1, WC), jnp.bfloat16)
        prev = jnp.concatenate([z, h16[:, : H - 1, :]], axis=1)        # row h-1
        nxt = jnp.concatenate([h16[:, 1:, :], z], axis=1)              # row h+1
        rows = jnp.concatenate([prev, h16, nxt], axis=2).reshape(NH, 3 * WC)
        return jnp.dot(rows, a_ref[...], preferred_element_type=jnp.float32)

    h1 = bn_relu(x)
    c1 = conv3x3(h1, a1_ref)
    h2 = bn_relu(c1)
    c2 = conv3x3(h2, a2_ref)

    o_ref[...] = (c2 + x).astype(o_ref.dtype)


def preact_block_slabs(x2d, a1, a2, *, N, H, W, C):
    """Run the kernel on an (N*H, W*C) row-slab input (lane-dense entry point)."""
    NH, WC = N * H, W * C
    kernel = functools.partial(preact_block_kernel, N=N, H=H, W=W, C=C)
    conv_flops = 2 * 2 * NH * (3 * WC) * WC  # two fused K=3*WC matmuls
    return pl.pallas_call(
        kernel,
        out_shape=jax.ShapeDtypeStruct((NH, WC), jnp.float32),
        in_specs=[
            pl.BlockSpec(memory_space=pltpu.MemorySpace.VMEM),
            pl.BlockSpec(memory_space=pltpu.MemorySpace.VMEM),
            pl.BlockSpec(memory_space=pltpu.MemorySpace.VMEM),
        ],
        out_specs=pl.BlockSpec(memory_space=pltpu.MemorySpace.VMEM),
        compiler_params=pltpu.CompilerParams(vmem_limit_bytes=64 << 20),
        cost_estimate=pl.CostEstimate(
            flops=conv_flops,
            transcendentals=2 * WC,  # two rsqrt rows
            bytes_accessed=2 * NH * WC * 4 + 2 * (3 * WC) * WC * 2),
    )(x2d, a1, a2)


def preact_block(x_nchw, w1_oihw, w2_oihw):
    """PreActBlock forward. x_nchw: (N,C,H,W); weights in PyTorch OIHW (Cout,Cin,3,3).

    Latency-sensitive callers holding NHWC activations can call
    `preact_block_slabs` directly with (N*H, W*C) slabs and skip the transposes.
    """
    N, C, H, W = x_nchw.shape
    Cout = w1_oihw.shape[0]
    assert Cout == C and w2_oihw.shape[0] == C, \
        "identity-shortcut config requires in_planes == planes (stride == 1)"
    assert W >= 2 and (W & (W - 1)) == 0, \
        "roll-butterfly BN reduce requires W to be a power of two"
    NH, WC = N * H, W * C

    # NCHW -> NHWC -> lane-dense (N*H, W*C) row slabs (channels minor in a row).
    x2d = jnp.transpose(x_nchw, (0, 2, 3, 1)).reshape(NH, WC).astype(jnp.float32)

    # Conv weights -> fused bf16 row-band matrices (3*W*C, W*C).
    a1 = band_weights_fused(w1_oihw, W).astype(jnp.bfloat16)
    a2 = band_weights_fused(w2_oihw, W).astype(jnp.bfloat16)

    out2d = preact_block_slabs(x2d, a1, a2, N=N, H=H, W=W, C=C)

    # back to PyTorch NCHW
    return jnp.transpose(out2d.reshape(N, H, W, C), (0, 3, 1, 2))


def preact_block_reference(x_nchw, w1_oihw, w2_oihw):
    """Pure-JAX f32 reference (verification only)."""
    def bn_relu(t):
        m = jnp.mean(t, axis=(0, 2, 3), keepdims=True)
        v = jnp.mean((t - m) ** 2, axis=(0, 2, 3), keepdims=True)
        return jax.nn.relu((t - m) * lax.rsqrt(v + BN_EPS))

    dn = ('NCHW', 'OIHW', 'NCHW')
    h = bn_relu(x_nchw)
    c1 = lax.conv_general_dilated(h, w1_oihw, (1, 1), 'SAME', dimension_numbers=dn)
    h2 = bn_relu(c1)
    c2 = lax.conv_general_dilated(h2, w2_oihw, (1, 1), 'SAME', dimension_numbers=dn)
    return c2 + x_nchw


if __name__ == "__main__":
    key = jax.random.PRNGKey(0)
    kx, k1, k2 = jax.random.split(key, 3)

    # Small shape with W*C = 128 so the row slabs are exactly lane-dense.
    N, C, H, W = 2, 8, 16, 16
    planes = C

    x = jax.random.normal(kx, (N, C, H, W), jnp.float32)
    # Deterministic synthetic weights (kaiming-like scale), PyTorch OIHW layout.
    w1 = jax.random.normal(k1, (planes, C, 3, 3), jnp.float32) * np.sqrt(2.0 / (C * 9))
    w2 = jax.random.normal(k2, (planes, planes, 3, 3), jnp.float32) * np.sqrt(2.0 / (planes * 9))

    fwd = jax.jit(preact_block)
    out = jax.block_until_ready(fwd(x, w1, w2))

    ref = preact_block_reference(x, w1, w2)
    # Tolerance accounts for bf16 MXU operands in the conv path; BN statistics
    # and all accumulation remain f32.
    np.testing.assert_allclose(np.asarray(out), np.asarray(ref), rtol=5e-2, atol=5e-2)

    print("KERNEL_OK")
</pallas_src>

<mosaic_0001>
module attributes {stable_mosaic.version = 11 : i64} {
  func.func @preact_block_kernel(%arg0: memref<32x128xf32, #tpu.memory_space<vmem>>, %arg1: memref<384x128xbf16, #tpu.memory_space<vmem>>, %arg2: memref<384x128xbf16, #tpu.memory_space<vmem>>, %arg3: memref<32x128xf32, #tpu.memory_space<vmem>>) attributes {dimension_semantics = [], scalar_prefetch = 0 : i64, scratch_operands = 0 : i64, tpu.core_type = #tpu.core_type<tc>} {
    %c0 = arith.constant 0 : index
    %c0_0 = arith.constant 0 : index
    %0 = vector.load %arg0[%c0, %c0_0] : memref<32x128xf32, #tpu.memory_space<vmem>>, vector<32x128xf32>
    %cst = arith.constant dense<0.000000e+00> : vector<128xf32>
    %1 = vector.multi_reduction <add>, %0, %cst [0] : vector<32x128xf32> to vector<128xf32>
    %2 = vector.shape_cast %1 : vector<128xf32> to vector<1x128xf32>
    %3 = arith.mulf %0, %0 : vector<32x128xf32>
    %cst_1 = arith.constant dense<0.000000e+00> : vector<128xf32>
    %4 = vector.multi_reduction <add>, %3, %cst_1 [0] : vector<32x128xf32> to vector<128xf32>
    %5 = vector.shape_cast %4 : vector<128xf32> to vector<1x128xf32>
    %6 = tpu.concatenate %2, %5 in 0 : vector<1x128xf32>, vector<1x128xf32> -> vector<2x128xf32>
    %c8_i32 = arith.constant 8 : i32
    %7 = tpu.dynamic_rotate %6 by %c8_i32 dim 1 : vector<2x128xf32>, i32 -> vector<2x128xf32>
    %8 = arith.addf %6, %7 : vector<2x128xf32>
    %c16_i32 = arith.constant 16 : i32
    %9 = tpu.dynamic_rotate %8 by %c16_i32 dim 1 : vector<2x128xf32>, i32 -> vector<2x128xf32>
    %10 = arith.addf %8, %9 : vector<2x128xf32>
    %c32_i32 = arith.constant 32 : i32
    %11 = tpu.dynamic_rotate %10 by %c32_i32 dim 1 : vector<2x128xf32>, i32 -> vector<2x128xf32>
    %12 = arith.addf %10, %11 : vector<2x128xf32>
    %c64_i32 = arith.constant 64 : i32
    %13 = tpu.dynamic_rotate %12 by %c64_i32 dim 1 : vector<2x128xf32>, i32 -> vector<2x128xf32>
    %14 = arith.addf %12, %13 : vector<2x128xf32>
    %cst_2 = arith.constant 0.001953125 : f32
    %15 = vector.broadcast %cst_2 : f32 to vector<2x128xf32>
    %16 = arith.mulf %14, %15 : vector<2x128xf32>
    %17 = vector.extract_strided_slice %16 {offsets = [0, 0], sizes = [1, 128], strides = [1, 1]} : vector<2x128xf32> to vector<1x128xf32>
    %18 = vector.extract_strided_slice %16 {offsets = [1, 0], sizes = [1, 128], strides = [1, 1]} : vector<2x128xf32> to vector<1x128xf32>
    %19 = arith.mulf %17, %17 : vector<1x128xf32>
    %20 = arith.subf %18, %19 : vector<1x128xf32>
    %cst_3 = arith.constant 9.99999974E-6 : f32
    %21 = vector.broadcast %cst_3 : f32 to vector<1x128xf32>
    %22 = arith.addf %20, %21 : vector<1x128xf32>
    %23 = math.rsqrt %22 : vector<1x128xf32>
    %24 = vector.broadcast %17 : vector<1x128xf32> to vector<32x128xf32>
    %25 = arith.subf %0, %24 : vector<32x128xf32>
    %26 = vector.broadcast %23 : vector<1x128xf32> to vector<32x128xf32>
    %27 = arith.mulf %25, %26 : vector<32x128xf32>
    %cst_4 = arith.constant 0.000000e+00 : f32
    %28 = vector.broadcast %cst_4 : f32 to vector<32x128xf32>
    %29 = arith.maximumf %27, %28 : vector<32x128xf32>
    %30 = arith.truncf %29 : vector<32x128xf32> to vector<32x128xbf16>
    %31 = vector.shape_cast %30 : vector<32x128xbf16> to vector<2x16x128xbf16>
    %cst_5 = arith.constant 0.000000e+00 : bf16
    %32 = vector.broadcast %cst_5 : bf16 to vector<2x1x128xbf16>
    %33 = vector.extract_strided_slice %31 {offsets = [0, 0, 0], sizes = [2, 15, 128], strides = [1, 1, 1]} : vector<2x16x128xbf16> to vector<2x15x128xbf16>
    %34 = tpu.concatenate %32, %33 in 1 : vector<2x1x128xbf16>, vector<2x15x128xbf16> -> vector<2x16x128xbf16>
    %35 = vector.extract_strided_slice %31 {offsets = [0, 1, 0], sizes = [2, 15, 128], strides = [1, 1, 1]} : vector<2x16x128xbf16> to vector<2x15x128xbf16>
    %36 = tpu.concatenate %35, %32 in 1 : vector<2x15x128xbf16>, vector<2x1x128xbf16> -> vector<2x16x128xbf16>
    %37 = tpu.concatenate %34, %31, %36 in 2 : vector<2x16x128xbf16>, vector<2x16x128xbf16>, vector<2x16x128xbf16> -> vector<2x16x384xbf16>
    %38 = vector.shape_cast %37 : vector<2x16x384xbf16> to vector<32x384xbf16>
    %c0_6 = arith.constant 0 : index
    %c0_7 = arith.constant 0 : index
    %39 = vector.load %arg1[%c0_6, %c0_7] : memref<384x128xbf16, #tpu.memory_space<vmem>>, vector<384x128xbf16>
    %cst_8 = arith.constant dense<0.000000e+00> : vector<32x128xf32>
    %40 = tpu.matmul %38, %39, %cst_8 {dimension_numbers = #tpu.dot_dimension_numbers<[1], [0], [0], [1], [0, 0, 1, 1], [], []>} : vector<32x384xbf16>, vector<384x128xbf16>, vector<32x128xf32> -> vector<32x128xf32>
    %cst_9 = arith.constant dense<0.000000e+00> : vector<128xf32>
    %41 = vector.multi_reduction <add>, %40, %cst_9 [0] : vector<32x128xf32> to vector<128xf32>
    %42 = vector.shape_cast %41 : vector<128xf32> to vector<1x128xf32>
    %43 = arith.mulf %40, %40 : vector<32x128xf32>
    %cst_10 = arith.constant dense<0.000000e+00> : vector<128xf32>
    %44 = vector.multi_reduction <add>, %43, %cst_10 [0] : vector<32x128xf32> to vector<128xf32>
    %45 = vector.shape_cast %44 : vector<128xf32> to vector<1x128xf32>
    %46 = tpu.concatenate %42, %45 in 0 : vector<1x128xf32>, vector<1x128xf32> -> vector<2x128xf32>
    %c8_i32_11 = arith.constant 8 : i32
    %47 = tpu.dynamic_rotate %46 by %c8_i32_11 dim 1 : vector<2x128xf32>, i32 -> vector<2x128xf32>
    %48 = arith.addf %46, %47 : vector<2x128xf32>
    %c16_i32_12 = arith.constant 16 : i32
    %49 = tpu.dynamic_rotate %48 by %c16_i32_12 dim 1 : vector<2x128xf32>, i32 -> vector<2x128xf32>
    %50 = arith.addf %48, %49 : vector<2x128xf32>
    %c32_i32_13 = arith.constant 32 : i32
    %51 = tpu.dynamic_rotate %50 by %c32_i32_13 dim 1 : vector<2x128xf32>, i32 -> vector<2x128xf32>
    %52 = arith.addf %50, %51 : vector<2x128xf32>
    %c64_i32_14 = arith.constant 64 : i32
    %53 = tpu.dynamic_rotate %52 by %c64_i32_14 dim 1 : vector<2x128xf32>, i32 -> vector<2x128xf32>
    %54 = arith.addf %52, %53 : vector<2x128xf32>
    %cst_15 = arith.constant 0.001953125 : f32
    %55 = vector.broadcast %cst_15 : f32 to vector<2x128xf32>
    %56 = arith.mulf %54, %55 : vector<2x128xf32>
    %57 = vector.extract_strided_slice %56 {offsets = [0, 0], sizes = [1, 128], strides = [1, 1]} : vector<2x128xf32> to vector<1x128xf32>
    %58 = vector.extract_strided_slice %56 {offsets = [1, 0], sizes = [1, 128], strides = [1, 1]} : vector<2x128xf32> to vector<1x128xf32>
    %59 = arith.mulf %57, %57 : vector<1x128xf32>
    %60 = arith.subf %58, %59 : vector<1x128xf32>
    %cst_16 = arith.constant 9.99999974E-6 : f32
    %61 = vector.broadcast %cst_16 : f32 to vector<1x128xf32>
    %62 = arith.addf %60, %61 : vector<1x128xf32>
    %63 = math.rsqrt %62 : vector<1x128xf32>
    %64 = vector.broadcast %57 : vector<1x128xf32> to vector<32x128xf32>
    %65 = arith.subf %40, %64 : vector<32x128xf32>
    %66 = vector.broadcast %63 : vector<1x128xf32> to vector<32x128xf32>
    %67 = arith.mulf %65, %66 : vector<32x128xf32>
    %cst_17 = arith.constant 0.000000e+00 : f32
    %68 = vector.broadcast %cst_17 : f32 to vector<32x128xf32>
    %69 = arith.maximumf %67, %68 : vector<32x128xf32>
    %70 = arith.truncf %69 : vector<32x128xf32> to vector<32x128xbf16>
    %71 = vector.shape_cast %70 : vector<32x128xbf16> to vector<2x16x128xbf16>
    %cst_18 = arith.constant 0.000000e+00 : bf16
    %72 = vector.broadcast %cst_18 : bf16 to vector<2x1x128xbf16>
    %73 = vector.extract_strided_slice %71 {offsets = [0, 0, 0], sizes = [2, 15, 128], strides = [1, 1, 1]} : vector<2x16x128xbf16> to vector<2x15x128xbf16>
    %74 = tpu.concatenate %72, %73 in 1 : vector<2x1x128xbf16>, vector<2x15x128xbf16> -> vector<2x16x128xbf16>
    %75 = vector.extract_strided_slice %71 {offsets = [0, 1, 0], sizes = [2, 15, 128], strides = [1, 1, 1]} : vector<2x16x128xbf16> to vector<2x15x128xbf16>
    %76 = tpu.concatenate %75, %72 in 1 : vector<2x15x128xbf16>, vector<2x1x128xbf16> -> vector<2x16x128xbf16>
    %77 = tpu.concatenate %74, %71, %76 in 2 : vector<2x16x128xbf16>, vector<2x16x128xbf16>, vector<2x16x128xbf16> -> vector<2x16x384xbf16>
    %78 = vector.shape_cast %77 : vector<2x16x384xbf16> to vector<32x384xbf16>
    %c0_19 = arith.constant 0 : index
    %c0_20 = arith.constant 0 : index
    %79 = vector.load %arg2[%c0_19, %c0_20] : memref<384x128xbf16, #tpu.memory_space<vmem>>, vector<384x128xbf16>
    %cst_21 = arith.constant dense<0.000000e+00> : vector<32x128xf32>
    %80 = tpu.matmul %78, %79, %cst_21 {dimension_numbers = #tpu.dot_dimension_numbers<[1], [0], [0], [1], [0, 0, 1, 1], [], []>} : vector<32x384xbf16>, vector<384x128xbf16>, vector<32x128xf32> -> vector<32x128xf32>
    %81 = arith.addf %80, %0 : vector<32x128xf32>
    %c0_22 = arith.constant 0 : index
    %c0_23 = arith.constant 0 : index
    %82 = vector.load %arg3[%c0_22, %c0_23] : memref<32x128xf32, #tpu.memory_space<vmem>>, vector<32x128xf32>
    tpu.vector_store %arg3[%c0_22, %c0_23], %81 {strides = array<i32>} : memref<32x128xf32, #tpu.memory_space<vmem>>, vector<32x128xf32>,
    return
  }
}

</mosaic_0001>

<llo_original>
// kernel: preact_block.1
$region0: #{preact_block.1}
  #allocation0 [shape = 'u32[]', space=smem, size = 0x4, offset = 0x4, fixed_abs, tag = 'smem constant byte address 0x4 - core index']
  #allocation1 [shape = 'u32[144,128]{1,0:T(1,128)}', space=vmem, size = 0x12000, scoped, tag = 'internal scratch']
  %s0 = inlined_call_operand.hbm [shape: f32[32,128], index: 0, kind: input, shape index: {}]
  %s1 = inlined_call_operand.hbm [shape: bf16[384,128], index: 1, kind: input, shape index: {}]
  %s2 = inlined_call_operand.hbm [shape: bf16[384,128], index: 2, kind: input, shape index: {}]
  %s3 = inlined_call_operand.hbm [shape: f32[32,128], index: 3, kind: output, shape index: {}]
  %s4 = sld [smem:[#allocation0]]
  $region34: #{preact_block.1} parent=0
    _
  %s6 = ssub.s32 1, %s4
  %s7 = scalar_select 0, %s6, %s4
  $region1: #{preact_block.1} parent=0
    #allocation2 [shape = 'u8[16384]{0}', space=vmem, size = 0x4000, scoped, tag = 'input window, operand 0, single buffered']
    #allocation3 [shape = 's32[1]{0}', space=sflag, size = 0x4, scoped, tag = 'scoped memory for preact_block.1']
    #allocation4 [shape = 's32[1]{0}', space=sflag, size = 0x4, scoped, tag = 'scoped memory for preact_block.1']
    #allocation5 [shape = 'u8[98304]{0}', space=vmem, size = 0x18000, scoped, tag = 'input window, operand 1, single buffered']
    #allocation6 [shape = 's32[1]{0}', space=sflag, size = 0x4, scoped, tag = 'scoped memory for preact_block.1']
    #allocation7 [shape = 'u8[98304]{0}', space=vmem, size = 0x18000, scoped, tag = 'input window, operand 2, single buffered']
    #allocation8 [shape = 'u8[16384]{0}', space=vmem, size = 0x4000, scoped, tag = 'output window, operand 0, single buffered']
    %8 = vsyncpa [#allocation3], 0
    %9 = vsyncpa [#allocation6], 0
    %10 = vsyncpa [#allocation4], 0
    // Predicated region
    $region2: #{preact_block.1} parent=1 // pred_check
      _
    $region3: #{preact_block.1} parent=1 // pred_check_branch
      %12 = sbr.rel (0) target = $region5
    $region4: #{preact_block.1} parent=1 // pred_region
      %s14 = ssub.s32 512, 512
      %15 = vsyncadd [#allocation3], %s14
      %s16 = sshll.u32 [#allocation2], 4
      %s17 = int_to_ptr.vmem [resolvable:$true] %s16
      %22 = dma.hbm_to_vmem [thread:$0]  %s0, 512, %s17, [#allocation3], 128, 128, 8
    $region5: #{preact_block.1} parent=1 // pred_fallthru
      _
    // Predicated region
    $region6: #{preact_block.1} parent=1 // pred_check
      _
    $region7: #{preact_block.1} parent=1 // pred_check_branch
      %24 = sbr.rel (0) target = $region9
    $region8: #{preact_block.1} parent=1 // pred_region
      %s26 = ssub.s32 3072, 3072
      %27 = vsyncadd [#allocation6], %s26
      %s28 = sshll.u32 [#allocation5], 4
      %s29 = int_to_ptr.vmem [resolvable:$true] %s28
      %34 = dma.hbm_to_vmem [thread:$0]  %s1, 3072, %s29, [#allocation6], 64, 64, 4
    $region9: #{preact_block.1} parent=1 // pred_fallthru
      _
    // Predicated region
    $region10: #{preact_block.1} parent=1 // pred_check
      _
    $region11: #{preact_block.1} parent=1 // pred_check_branch
      %36 = sbr.rel (0) target = $region13
    $region12: #{preact_block.1} parent=1 // pred_region
      %s38 = ssub.s32 3072, 3072
      %39 = vsyncadd [#allocation6], %s38
      %s40 = sshll.u32 [#allocation7], 4
      %s41 = int_to_ptr.vmem [resolvable:$true] %s40
      %46 = dma.hbm_to_vmem [thread:$0]  %s2, 3072, %s41, [#allocation6], 64, 64, 4
    $region13: #{preact_block.1} parent=1 // pred_fallthru
      _
    // Predicated region
    $region14: #{preact_block.1} parent=1 // pred_check
      _
    $region15: #{preact_block.1} parent=1 // pred_check_branch
      %48 = sbr.rel (0) target = $region17
    $region16: #{preact_block.1} parent=1 // pred_region
      %49 = dma.done [#allocation3], 512
    $region17: #{preact_block.1} parent=1 // pred_fallthru
      _
    // Predicated region
    $region18: #{preact_block.1} parent=1 // pred_check
      _
    $region19: #{preact_block.1} parent=1 // pred_check_branch
      %51 = sbr.rel (0) target = $region21
    $region20: #{preact_block.1} parent=1 // pred_region
      %52 = dma.done [#allocation6], 3072
    $region21: #{preact_block.1} parent=1 // pred_fallthru
      _
    // Predicated region
    $region22: #{preact_block.1} parent=1 // pred_check
      _
    $region23: #{preact_block.1} parent=1 // pred_check_branch
      %54 = sbr.rel (0) target = $region25
    $region24: #{preact_block.1} parent=1 // pred_region
      %55 = dma.done [#allocation6], 3072
    $region25: #{preact_block.1} parent=1 // pred_fallthru
      _
    %v57 = vld [vmem:[#allocation2] sm:$0xff]
    %v58 = vld [vmem:[#allocation2 + $0x8] sm:$0xff]
    %v59 = vld [vmem:[#allocation2 + $0x10] sm:$0xff]
    %v60 = vld [vmem:[#allocation2 + $0x18] sm:$0xff]
    %v61 = vadd.f32 %v57, %v58
    %v62 = vadd.f32 %v61, %v59
    %v63 = vadd.f32 %v62, %v60
    %v64 = vrot.slane %v63, 4
    %v65 = vadd.f32 %v63, %v64
    %v66 = vrot.slane %v65, 2
    %v67 = vadd.f32 %v65, %v66
    %v68 = vrot.slane %v67, 1
    %v69 = vadd.f32 %v67, %v68
    %v70 = vmul.f32 %v57, %v57
    %v71 = vmul.f32 %v58, %v58
    %v72 = vmul.f32 %v59, %v59
    %v73 = vmul.f32 %v60, %v60
    %v74 = vadd.f32 %v70, %v71
    %v75 = vadd.f32 %v74, %v72
    %v76 = vadd.f32 %v75, %v73
    %v77 = vrot.slane %v76, 4
    %v78 = vadd.f32 %v76, %v77
    %v79 = vrot.slane %v78, 2
    %v80 = vadd.f32 %v78, %v79
    %v81 = vrot.slane %v80, 1
    %v82 = vadd.f32 %v80, %v81
    %vm83 = vcmask 1040384
    %v84 = vsel %vm83, %v69, %v82
    %85 = vrot.lane.b32.xlu0 %v84, 8
    %v86 = vpop.permute.xlu0 %85
    %v87 = vadd.f32 %v84, %v86
    %88 = vrot.lane.b32.xlu0 %v87, 16
    %v89 = vpop.permute.xlu0 %88
    %v90 = vadd.f32 %v87, %v89
    %91 = vrot.lane.b32.xlu0 %v90, 32
    %v92 = vpop.permute.xlu0 %91
    %v93 = vadd.f32 %v90, %v92
    %94 = vrot.lane.b32.xlu0 %v93, 64
    %v95 = vpop.permute.xlu0 %94
    %v96 = vadd.f32 %v93, %v95
    %v97 = vmul.f32 %v96, 0.001953125
    %v98 = vmul.f32 %v97, %v97
    %v100 = vrot.slane %v98, 7
    %v102 = vsub.f32 %v97, %v100
    %v103 = vadd.f32 %v102, 1e-05
    %v104 = vrsqrt.pop %v103
    %v105 = vlaneseq
    %v106 = vshrl.u32 %v105, 7
    %v107 = vsub.s32 0, %v106
    %v108 = vrot.slane %v97, %v107
    %v109 = vsub.f32 %v57, %v108
    %v110 = vsub.f32 %v58, %v108
    %v111 = vsub.f32 %v59, %v108
    %v112 = vsub.f32 %v60, %v108
    %v113 = vlaneseq
    %v114 = vshrl.u32 %v113, 7
    %v115 = vsub.s32 1, %v114
    %v116 = vrot.slane %v104, %v115
    %v117 = vmul.f32 %v109, %v116
    %v118 = vmul.f32 %v110, %v116
    %v119 = vmul.f32 %v111, %v116
    %v120 = vmul.f32 %v112, %v116
    %v121 = vmax.f32 %v117, 0.0
    %v122 = vmax.f32 %v118, 0.0
    %v123 = vmax.f32 %v119, 0.0
    %v124 = vmax.f32 %v120, 0.0
    %v125 = vpack.c.bf16 %v122, %v121
    %v126 = vpack.c.bf16 %v124, %v123
    %v128 = vshrl.u32 %v125, 16
    %v130 = vrot.slane %v128, 7
    %v131 = vshll.u32 %v125, 16
    %v133 = vor.u32 %v130, %v131
    %v135 = vshrl.u32 %v126, 16
    %v137 = vrot.slane %v135, 7
    %v138 = vshll.u32 %v126, 16
    %v140 = vor.u32 %v137, %v138
    %vm143 = vcmask 1040384
    %vm144 = vsmask.f32 256
    %vm145 = vmand %vm143, %vm144
    %v146 = vsel %vm145, 0, %v133
    %v147 = vsel %vm145, 0, %v140
    %v148 = vrot.slane %v131, 1
    %v149 = vor.u32 %v128, %v148
    %v150 = vrot.slane %v138, 1
    %v151 = vor.u32 %v135, %v150
    %vm154 = vcmask 1047552
    %vm155 = vsmask.f32 7424
    %vm156 = vmand %vm154, %vm155
    %v157 = vsel %vm156, %v149, 0
    %v158 = vsel %vm156, %v151, 0
    %v159 = vld [vmem:[#allocation5] sm:$0xf]
    %v160 = vld [vmem:[#allocation5 + $0x4] sm:$0xf]
    %v161 = vld [vmem:[#allocation5 + $0x8] sm:$0xf]
    %v162 = vld [vmem:[#allocation5 + $0xc] sm:$0xf]
    %v163 = vld [vmem:[#allocation5 + $0x10] sm:$0xf]
    %v164 = vld [vmem:[#allocation5 + $0x14] sm:$0xf]
    %v165 = vld [vmem:[#allocation5 + $0x18] sm:$0xf]
    %v166 = vld [vmem:[#allocation5 + $0x1c] sm:$0xf]
    %v167 = vld [vmem:[#allocation5 + $0x20] sm:$0xf]
    %v168 = vld [vmem:[#allocation5 + $0x24] sm:$0xf]
    %v169 = vld [vmem:[#allocation5 + $0x28] sm:$0xf]
    %v170 = vld [vmem:[#allocation5 + $0x2c] sm:$0xf]
    %v171 = vld [vmem:[#allocation5 + $0x30] sm:$0xf]
    %v172 = vld [vmem:[#allocation5 + $0x34] sm:$0xf]
    %v173 = vld [vmem:[#allocation5 + $0x38] sm:$0xf]
    %v174 = vld [vmem:[#allocation5 + $0x3c] sm:$0xf]
    %v175 = vld [vmem:[#allocation5 + $0x40] sm:$0xf]
    %v176 = vld [vmem:[#allocation5 + $0x44] sm:$0xf]
    %v177 = vld [vmem:[#allocation5 + $0x48] sm:$0xf]
    %v178 = vld [vmem:[#allocation5 + $0x4c] sm:$0xf]
    %v179 = vld [vmem:[#allocation5 + $0x50] sm:$0xf]
    %v180 = vld [vmem:[#allocation5 + $0x54] sm:$0xf]
    %v181 = vld [vmem:[#allocation5 + $0x58] sm:$0xf]
    %v182 = vld [vmem:[#allocation5 + $0x5c] sm:$0xf]
    %v183 = vld [vmem:[#allocation5 + $0x60] sm:$0xf]
    %v184 = vld [vmem:[#allocation5 + $0x64] sm:$0xf]
    %v185 = vld [vmem:[#allocation5 + $0x68] sm:$0xf]
    %v186 = vld [vmem:[#allocation5 + $0x6c] sm:$0xf]
    %v187 = vld [vmem:[#allocation5 + $0x70] sm:$0xf]
    %v188 = vld [vmem:[#allocation5 + $0x74] sm:$0xf]
    %v189 = vld [vmem:[#allocation5 + $0x78] sm:$0xf]
    %v190 = vld [vmem:[#allocation5 + $0x7c] sm:$0xf]
    %v191 = vld [vmem:[#allocation5 + $0x80] sm:$0xf]
    %v192 = vld [vmem:[#allocation5 + $0x84] sm:$0xf]
    %v193 = vld [vmem:[#allocation5 + $0x88] sm:$0xf]
    %v194 = vld [vmem:[#allocation5 + $0x8c] sm:$0xf]
    %v195 = vld [vmem:[#allocation5 + $0x90] sm:$0xf]
    %v196 = vld [vmem:[#allocation5 + $0x94] sm:$0xf]
    %v197 = vld [vmem:[#allocation5 + $0x98] sm:$0xf]
    %v198 = vld [vmem:[#allocation5 + $0x9c] sm:$0xf]
    %v199 = vld [vmem:[#allocation5 + $0xa0] sm:$0xf]
    %v200 = vld [vmem:[#allocation5 + $0xa4] sm:$0xf]
    %v201 = vld [vmem:[#allocation5 + $0xa8] sm:$0xf]
    %v202 = vld [vmem:[#allocation5 + $0xac] sm:$0xf]
    %v203 = vld [vmem:[#allocation5 + $0xb0] sm:$0xf]
    %v204 = vld [vmem:[#allocation5 + $0xb4] sm:$0xf]
    %v205 = vld [vmem:[#allocation5 + $0xb8] sm:$0xf]
    %v206 = vld [vmem:[#allocation5 + $0xbc] sm:$0xf]
    %v255 = vunpack.c.l.b16 %v159
    %v256 = vunpack.c.l.b16 %v160
    %v257 = vunpack.c.l.b16 %v161
    %v258 = vunpack.c.l.b16 %v162
    %v259 = vunpack.c.l.b16 %v163
    %v260 = vunpack.c.l.b16 %v164
    %v261 = vunpack.c.l.b16 %v165
    %v262 = vunpack.c.l.b16 %v166
    %v263 = vunpack.c.l.b16 %v167
    %v264 = vunpack.c.l.b16 %v168
    %v265 = vunpack.c.l.b16 %v169
    %v266 = vunpack.c.l.b16 %v170
    %v267 = vunpack.c.l.b16 %v171
    %v268 = vunpack.c.l.b16 %v172
    %v269 = vunpack.c.l.b16 %v173
    %v270 = vunpack.c.l.b16 %v174
    %v271 = vunpack.c.l.b16 %v175
    %v272 = vunpack.c.l.b16 %v176
    %v273 = vunpack.c.l.b16 %v177
    %v274 = vunpack.c.l.b16 %v178
    %v275 = vunpack.c.l.b16 %v179
    %v276 = vunpack.c.l.b16 %v180
    %v277 = vunpack.c.l.b16 %v181
    %v278 = vunpack.c.l.b16 %v182
    %v279 = vunpack.c.l.b16 %v183
    %v280 = vunpack.c.l.b16 %v184
    %v281 = vunpack.c.l.b16 %v185
    %v282 = vunpack.c.l.b16 %v186
    %v283 = vunpack.c.l.b16 %v187
    %v284 = vunpack.c.l.b16 %v188
    %v285 = vunpack.c.l.b16 %v189
    %v286 = vunpack.c.l.b16 %v190
    %v287 = vunpack.c.l.b16 %v191
    %v288 = vunpack.c.l.b16 %v192
    %v289 = vunpack.c.l.b16 %v193
    %v290 = vunpack.c.l.b16 %v194
    %v291 = vunpack.c.l.b16 %v195
    %v292 = vunpack.c.l.b16 %v196
    %v293 = vunpack.c.l.b16 %v197
    %v294 = vunpack.c.l.b16 %v198
    %v295 = vunpack.c.l.b16 %v199
    %v296 = vunpack.c.l.b16 %v200
    %v297 = vunpack.c.l.b16 %v201
    %v298 = vunpack.c.l.b16 %v202
    %v299 = vunpack.c.l.b16 %v203
    %v300 = vunpack.c.l.b16 %v204
    %v301 = vunpack.c.l.b16 %v205
    %v302 = vunpack.c.l.b16 %v206
    %v303 = vpack.c.b16 %v256, %v255
    %v304 = vpack.c.b16 %v258, %v257
    %v305 = vpack.c.b16 %v260, %v259
    %v306 = vpack.c.b16 %v262, %v261
    %v307 = vpack.c.b16 %v264, %v263
    %v308 = vpack.c.b16 %v266, %v265
    %v309 = vpack.c.b16 %v268, %v267
    %v310 = vpack.c.b16 %v270, %v269
    %v311 = vpack.c.b16 %v272, %v271
    %v312 = vpack.c.b16 %v274, %v273
    %v313 = vpack.c.b16 %v276, %v275
    %v314 = vpack.c.b16 %v278, %v277
    %v315 = vpack.c.b16 %v280, %v279
    %v316 = vpack.c.b16 %v282, %v281
    %v317 = vpack.c.b16 %v284, %v283
    %v318 = vpack.c.b16 %v286, %v285
    %v319 = vpack.c.b16 %v288, %v287
    %v320 = vpack.c.b16 %v290, %v289
    %v321 = vpack.c.b16 %v292, %v291
    %v322 = vpack.c.b16 %v294, %v293
    %v323 = vpack.c.b16 %v296, %v295
    %v324 = vpack.c.b16 %v298, %v297
    %v325 = vpack.c.b16 %v300, %v299
    %v326 = vpack.c.b16 %v302, %v301
    %351 = vmatprep.subr.bf16.mxu0 0
    %352 = vmatpush1.bf16.msra.mxu0 %v303
    %353 = vmatprep.subr.bf16.mxu0 0
    %354 = vmatpush1.bf16.msra.mxu0 %v304
    %355 = vmatprep.subr.bf16.mxu0 0
    %356 = vmatpush1.bf16.msra.mxu0 %v305
    %357 = vmatprep.subr.bf16.mxu0 0
    %358 = vmatpush1.bf16.msra.mxu0 %v306
    %359 = vmatprep.subr.bf16.mxu0 0
    %360 = vmatpush1.bf16.msra.mxu0 %v307
    %361 = vmatprep.subr.bf16.mxu0 0
    %362 = vmatpush1.bf16.msra.mxu0 %v308
    %363 = vmatprep.subr.bf16.mxu0 0
    %364 = vmatpush1.bf16.msra.mxu0 %v309
    %365 = vmatprep.subr.bf16.mxu0 0
    %366 = vmatpush1.bf16.msra.mxu0 %v310
    %367 = vmatprep.subr.bf16.mxu0 0
    %368 = vmatpush1.bf16.msra.mxu0 %v311
    %369 = vmatprep.subr.bf16.mxu0 0
    %370 = vmatpush1.bf16.msra.mxu0 %v312
    %371 = vmatprep.subr.bf16.mxu0 0
    %372 = vmatpush1.bf16.msra.mxu0 %v313
    %373 = vmatprep.subr.bf16.mxu0 0
    %374 = vmatpush1.bf16.msra.mxu0 %v314
    %375 = vmatprep.subr.bf16.mxu0 0
    %376 = vmatpush1.bf16.msra.mxu0 %v315
    %377 = vmatprep.subr.bf16.mxu0 0
    %378 = vmatpush1.bf16.msra.mxu0 %v316
    %379 = vmatprep.subr.bf16.mxu0 0
    %380 = vmatpush1.bf16.msra.mxu0 %v317
    %381 = vmatprep.subr.bf16.mxu0 0
    %382 = vmatpush1.bf16.msra.mxu0 %v318
    %383 = vmatprep.mubr.bf16.mxu0 %v125
    %384 = vmatmul.mubr.bf16.gmra.mrb[0].mxu0 %v146
    %v385 = vpop.f32.mrb[0].mxu0
    %v386 = vadd.f32 0.0, %v385
    %v387 = vpop.f32.mrb[0].mxu0
    %v388 = vpop.f32.mrb[0].mxu0
    %v389 = vadd.f32 0.0, %v388
    %v390 = vpop.f32.mrb[0].mxu0
    %391 = vmatprep.mubr.bf16.mxu0 %v126
    %392 = vmatmul.mubr.bf16.gmra.mrb[0].mxu0 %v147
    %v393 = vpop.f32.mrb[0].mxu0
    %v394 = vadd.f32 0.0, %v393
    %v395 = vpop.f32.mrb[0].mxu0
    %v396 = vpop.f32.mrb[0].mxu0
    %v397 = vadd.f32 0.0, %v396
    %v398 = vpop.f32.mrb[0].mxu0
    %399 = vdwg.mxu0
    %400 = vmatprep.subr.bf16.mxu0 0
    %401 = vmatpush1.bf16.msra.mxu0 %v319
    %402 = vmatprep.subr.bf16.mxu0 0
    %403 = vmatpush1.bf16.msra.mxu0 %v320
    %404 = vmatprep.subr.bf16.mxu0 0
    %405 = vmatpush1.bf16.msra.mxu0 %v321
    %406 = vmatprep.subr.bf16.mxu0 0
    %407 = vmatpush1.bf16.msra.mxu0 %v322
    %408 = vmatprep.subr.bf16.mxu0 0
    %409 = vmatpush1.bf16.msra.mxu0 %v323
    %410 = vmatprep.subr.bf16.mxu0 0
    %411 = vmatpush1.bf16.msra.mxu0 %v324
    %412 = vmatprep.subr.bf16.mxu0 0
    %413 = vmatpush1.bf16.msra.mxu0 %v325
    %414 = vmatprep.subr.bf16.mxu0 0
    %415 = vmatpush1.bf16.msra.mxu0 %v326
    %416 = vmatprep.subr.bf16.mxu0 0
    %417 = vmatpush1.bf16.msra.mxu0 0
    %418 = vmatprep.subr.bf16.mxu0 0
    %419 = vmatpush1.bf16.msra.mxu0 0
    %420 = vmatprep.subr.bf16.mxu0 0
    %421 = vmatpush1.bf16.msra.mxu0 0
    %422 = vmatprep.subr.bf16.mxu0 0
    %423 = vmatpush1.bf16.msra.mxu0 0
    %424 = vmatprep.subr.bf16.mxu0 0
    %425 = vmatpush1.bf16.msra.mxu0 0
    %426 = vmatprep.subr.bf16.mxu0 0
    %427 = vmatpush1.bf16.msra.mxu0 0
    %428 = vmatprep.subr.bf16.mxu0 0
    %429 = vmatpush1.bf16.msra.mxu0 0
    %430 = vmatprep.subr.bf16.mxu0 0
    %431 = vmatpush1.bf16.msra.mxu0 0
    %432 = vmatprep.mubr.bf16.mxu0 0
    %433 = vmatmul.mubr.bf16.gmra.mrb[0].mxu0 %v157
    %v434 = vpop.f32.mrb[0].mxu0
    %v435 = vadd.f32 %v386, %v434
    %v436 = vpop.f32.mrb[0].mxu0
    %v437 = vpop.f32.mrb[0].mxu0
    %v438 = vadd.f32 %v389, %v437
    %v439 = vpop.f32.mrb[0].mxu0
    %440 = vmatprep.mubr.bf16.mxu0 0
    %441 = vmatmul.mubr.bf16.gmra.mrb[0].mxu0 %v158
    %v442 = vpop.f32.mrb[0].mxu0
    %v443 = vadd.f32 %v394, %v442
    %v444 = vpop.f32.mrb[0].mxu0
    %v445 = vpop.f32.mrb[0].mxu0
    %v446 = vadd.f32 %v397, %v445
    %v447 = vpop.f32.mrb[0].mxu0
    %448 = vdwg.mxu0
    %v449 = vadd.f32 %v435, %v438
    %v450 = vadd.f32 %v449, %v443
    %v451 = vadd.f32 %v450, %v446
    %v452 = vrot.slane %v451, 4
    %v453 = vadd.f32 %v451, %v452
    %v454 = vrot.slane %v453, 2
    %v455 = vadd.f32 %v453, %v454
    %v456 = vrot.slane %v455, 1
    %v457 = vadd.f32 %v455, %v456
    %v458 = vmul.f32 %v435, %v435
    %v459 = vmul.f32 %v438, %v438
    %v460 = vmul.f32 %v443, %v443
    %v461 = vmul.f32 %v446, %v446
    %v462 = vadd.f32 %v458, %v459
    %v463 = vadd.f32 %v462, %v460
    %v464 = vadd.f32 %v463, %v461
    %v465 = vrot.slane %v464, 4
    %v466 = vadd.f32 %v464, %v465
    %v467 = vrot.slane %v466, 2
    %v468 = vadd.f32 %v466, %v467
    %v469 = vrot.slane %v468, 1
    %v470 = vadd.f32 %v468, %v469
    %v471 = vsel %vm83, %v457, %v470
    %472 = vrot.lane.b32.xlu0 %v471, 8
    %v473 = vpop.permute.xlu0 %472
    %v474 = vadd.f32 %v471, %v473
    %475 = vrot.lane.b32.xlu0 %v474, 16
    %v476 = vpop.permute.xlu0 %475
    %v477 = vadd.f32 %v474, %v476
    %478 = vrot.lane.b32.xlu0 %v477, 32
    %v479 = vpop.permute.xlu0 %478
    %v480 = vadd.f32 %v477, %v479
    %481 = vrot.lane.b32.xlu0 %v480, 64
    %v482 = vpop.permute.xlu0 %481
    %v483 = vadd.f32 %v480, %v482
    %v484 = vmul.f32 %v483, 0.001953125
    %v485 = vmul.f32 %v484, %v484
    %v487 = vrot.slane %v485, 7
    %v489 = vsub.f32 %v484, %v487
    %v490 = vadd.f32 %v489, 1e-05
    %v491 = vrsqrt.pop %v490
    %v492 = vlaneseq
    %v493 = vshrl.u32 %v492, 7
    %v494 = vsub.s32 0, %v493
    %v495 = vrot.slane %v484, %v494
    %v496 = vsub.f32 %v435, %v495
    %v497 = vsub.f32 %v438, %v495
    %v498 = vsub.f32 %v443, %v495
    %v499 = vsub.f32 %v446, %v495
    %v500 = vlaneseq
    %v501 = vshrl.u32 %v500, 7
    %v502 = vsub.s32 1, %v501
    %v503 = vrot.slane %v491, %v502
    %v504 = vmul.f32 %v496, %v503
    %v505 = vmul.f32 %v497, %v503
    %v506 = vmul.f32 %v498, %v503
    %v507 = vmul.f32 %v499, %v503
    %v508 = vmax.f32 %v504, 0.0
    %v509 = vmax.f32 %v505, 0.0
    %v510 = vmax.f32 %v506, 0.0
    %v511 = vmax.f32 %v507, 0.0
    %v512 = vpack.c.bf16 %v509, %v508
    %v513 = vpack.c.bf16 %v511, %v510
    %v515 = vshrl.u32 %v512, 16
    %v517 = vrot.slane %v515, 7
    %v518 = vshll.u32 %v512, 16
    %v520 = vor.u32 %v517, %v518
    %v522 = vshrl.u32 %v513, 16
    %v524 = vrot.slane %v522, 7
    %v525 = vshll.u32 %v513, 16
    %v527 = vor.u32 %v524, %v525
    %v530 = vsel %vm145, 0, %v520
    %v531 = vsel %vm145, 0, %v527
    %v532 = vrot.slane %v518, 1
    %v533 = vor.u32 %v515, %v532
    %v534 = vrot.slane %v525, 1
    %v535 = vor.u32 %v522, %v534
    %v538 = vsel %vm156, %v533, 0
    %v539 = vsel %vm156, %v535, 0
    %v540 = vld [vmem:[#allocation7] sm:$0xf]
    %v541 = vld [vmem:[#allocation7 + $0x4] sm:$0xf]
    %v542 = vld [vmem:[#allocation7 + $0x8] sm:$0xf]
    %v543 = vld [vmem:[#allocation7 + $0xc] sm:$0xf]
    %v544 = vld [vmem:[#allocation7 + $0x10] sm:$0xf]
    %v545 = vld [vmem:[#allocation7 + $0x14] sm:$0xf]
    %v546 = vld [vmem:[#allocation7 + $0x18] sm:$0xf]
    %v547 = vld [vmem:[#allocation7 + $0x1c] sm:$0xf]
    %v548 = vld [vmem:[#allocation7 + $0x20] sm:$0xf]
    %v549 = vld [vmem:[#allocation7 + $0x24] sm:$0xf]
    %v550 = vld [vmem:[#allocation7 + $0x28] sm:$0xf]
    %v551 = vld [vmem:[#allocation7 + $0x2c] sm:$0xf]
    %v552 = vld [vmem:[#allocation7 + $0x30] sm:$0xf]
    %v553 = vld [vmem:[#allocation7 + $0x34] sm:$0xf]
    %v554 = vld [vmem:[#allocation7 + $0x38] sm:$0xf]
    %v555 = vld [vmem:[#allocation7 + $0x3c] sm:$0xf]
    %v556 = vld [vmem:[#allocation7 + $0x40] sm:$0xf]
    %v557 = vld [vmem:[#allocation7 + $0x44] sm:$0xf]
    %v558 = vld [vmem:[#allocation7 + $0x48] sm:$0xf]
    %v559 = vld [vmem:[#allocation7 + $0x4c] sm:$0xf]
    %v560 = vld [vmem:[#allocation7 + $0x50] sm:$0xf]
    %v561 = vld [vmem:[#allocation7 + $0x54] sm:$0xf]
    %v562 = vld [vmem:[#allocation7 + $0x58] sm:$0xf]
    %v563 = vld [vmem:[#allocation7 + $0x5c] sm:$0xf]
    %v564 = vld [vmem:[#allocation7 + $0x60] sm:$0xf]
    %v565 = vld [vmem:[#allocation7 + $0x64] sm:$0xf]
    %v566 = vld [vmem:[#allocation7 + $0x68] sm:$0xf]
    %v567 = vld [vmem:[#allocation7 + $0x6c] sm:$0xf]
    %v568 = vld [vmem:[#allocation7 + $0x70] sm:$0xf]
    %v569 = vld [vmem:[#allocation7 + $0x74] sm:$0xf]
    %v570 = vld [vmem:[#allocation7 + $0x78] sm:$0xf]
    %v571 = vld [vmem:[#allocation7 + $0x7c] sm:$0xf]
    %v572 = vld [vmem:[#allocation7 + $0x80] sm:$0xf]
    %v573 = vld [vmem:[#allocation7 + $0x84] sm:$0xf]
    %v574 = vld [vmem:[#allocation7 + $0x88] sm:$0xf]
    %v575 = vld [vmem:[#allocation7 + $0x8c] sm:$0xf]
    %v576 = vld [vmem:[#allocation7 + $0x90] sm:$0xf]
    %v577 = vld [vmem:[#allocation7 + $0x94] sm:$0xf]
    %v578 = vld [vmem:[#allocation7 + $0x98] sm:$0xf]
    %v579 = vld [vmem:[#allocation7 + $0x9c] sm:$0xf]
    %v580 = vld [vmem:[#allocation7 + $0xa0] sm:$0xf]
    %v581 = vld [vmem:[#allocation7 + $0xa4] sm:$0xf]
    %v582 = vld [vmem:[#allocation7 + $0xa8] sm:$0xf]
    %v583 = vld [vmem:[#allocation7 + $0xac] sm:$0xf]
    %v584 = vld [vmem:[#allocation7 + $0xb0] sm:$0xf]
    %v585 = vld [vmem:[#allocation7 + $0xb4] sm:$0xf]
    %v586 = vld [vmem:[#allocation7 + $0xb8] sm:$0xf]
    %v587 = vld [vmem:[#allocation7 + $0xbc] sm:$0xf]
    %v636 = vunpack.c.l.b16 %v540
    %v637 = vunpack.c.l.b16 %v541
    %v638 = vunpack.c.l.b16 %v542
    %v639 = vunpack.c.l.b16 %v543
    %v640 = vunpack.c.l.b16 %v544
    %v641 = vunpack.c.l.b16 %v545
    %v642 = vunpack.c.l.b16 %v546
    %v643 = vunpack.c.l.b16 %v547
    %v644 = vunpack.c.l.b16 %v548
    %v645 = vunpack.c.l.b16 %v549
    %v646 = vunpack.c.l.b16 %v550
    %v647 = vunpack.c.l.b16 %v551
    %v648 = vunpack.c.l.b16 %v552
    %v649 = vunpack.c.l.b16 %v553
    %v650 = vunpack.c.l.b16 %v554
    %v651 = vunpack.c.l.b16 %v555
    %v652 = vunpack.c.l.b16 %v556
    %v653 = vunpack.c.l.b16 %v557
    %v654 = vunpack.c.l.b16 %v558
    %v655 = vunpack.c.l.b16 %v559
    %v656 = vunpack.c.l.b16 %v560
    %v657 = vunpack.c.l.b16 %v561
    %v658 = vunpack.c.l.b16 %v562
    %v659 = vunpack.c.l.b16 %v563
    %v660 = vunpack.c.l.b16 %v564
    %v661 = vunpack.c.l.b16 %v565
    %v662 = vunpack.c.l.b16 %v566
    %v663 = vunpack.c.l.b16 %v567
    %v664 = vunpack.c.l.b16 %v568
    %v665 = vunpack.c.l.b16 %v569
    %v666 = vunpack.c.l.b16 %v570
    %v667 = vunpack.c.l.b16 %v571
    %v668 = vunpack.c.l.b16 %v572
    %v669 = vunpack.c.l.b16 %v573
    %v670 = vunpack.c.l.b16 %v574
    %v671 = vunpack.c.l.b16 %v575
    %v672 = vunpack.c.l.b16 %v576
    %v673 = vunpack.c.l.b16 %v577
    %v674 = vunpack.c.l.b16 %v578
    %v675 = vunpack.c.l.b16 %v579
    %v676 = vunpack.c.l.b16 %v580
    %v677 = vunpack.c.l.b16 %v581
    %v678 = vunpack.c.l.b16 %v582
    %v679 = vunpack.c.l.b16 %v583
    %v680 = vunpack.c.l.b16 %v584
    %v681 = vunpack.c.l.b16 %v585
    %v682 = vunpack.c.l.b16 %v586
    %v683 = vunpack.c.l.b16 %v587
    %v684 = vpack.c.b16 %v637, %v636
    %v685 = vpack.c.b16 %v639, %v638
    %v686 = vpack.c.b16 %v641, %v640
    %v687 = vpack.c.b16 %v643, %v642
    %v688 = vpack.c.b16 %v645, %v644
    %v689 = vpack.c.b16 %v647, %v646
    %v690 = vpack.c.b16 %v649, %v648
    %v691 = vpack.c.b16 %v651, %v650
    %v692 = vpack.c.b16 %v653, %v652
    %v693 = vpack.c.b16 %v655, %v654
    %v694 = vpack.c.b16 %v657, %v656
    %v695 = vpack.c.b16 %v659, %v658
    %v696 = vpack.c.b16 %v661, %v660
    %v697 = vpack.c.b16 %v663, %v662
    %v698 = vpack.c.b16 %v665, %v664
    %v699 = vpack.c.b16 %v667, %v666
    %v700 = vpack.c.b16 %v669, %v668
    %v701 = vpack.c.b16 %v671, %v670
    %v702 = vpack.c.b16 %v673, %v672
    %v703 = vpack.c.b16 %v675, %v674
    %v704 = vpack.c.b16 %v677, %v676
    %v705 = vpack.c.b16 %v679, %v678
    %v706 = vpack.c.b16 %v681, %v680
    %v707 = vpack.c.b16 %v683, %v682
    %732 = vmatprep.subr.bf16.mxu0 0
    %733 = vmatpush1.bf16.msra.mxu0 %v684
    %734 = vmatprep.subr.bf16.mxu0 0
    %735 = vmatpush1.bf16.msra.mxu0 %v685
    %736 = vmatprep.subr.bf16.mxu0 0
    %737 = vmatpush1.bf16.msra.mxu0 %v686
    %738 = vmatprep.subr.bf16.mxu0 0
    %739 = vmatpush1.bf16.msra.mxu0 %v687
    %740 = vmatprep.subr.bf16.mxu0 0
    %741 = vmatpush1.bf16.msra.mxu0 %v688
    %742 = vmatprep.subr.bf16.mxu0 0
    %743 = vmatpush1.bf16.msra.mxu0 %v689
    %744 = vmatprep.subr.bf16.mxu0 0
    %745 = vmatpush1.bf16.msra.mxu0 %v690
    %746 = vmatprep.subr.bf16.mxu0 0
    %747 = vmatpush1.bf16.msra.mxu0 %v691
    %748 = vmatprep.subr.bf16.mxu0 0
    %749 = vmatpush1.bf16.msra.mxu0 %v692
    %750 = vmatprep.subr.bf16.mxu0 0
    %751 = vmatpush1.bf16.msra.mxu0 %v693
    %752 = vmatprep.subr.bf16.mxu0 0
    %753 = vmatpush1.bf16.msra.mxu0 %v694
    %754 = vmatprep.subr.bf16.mxu0 0
    %755 = vmatpush1.bf16.msra.mxu0 %v695
    %756 = vmatprep.subr.bf16.mxu0 0
    %757 = vmatpush1.bf16.msra.mxu0 %v696
    %758 = vmatprep.subr.bf16.mxu0 0
    %759 = vmatpush1.bf16.msra.mxu0 %v697
    %760 = vmatprep.subr.bf16.mxu0 0
    %761 = vmatpush1.bf16.msra.mxu0 %v698
    %762 = vmatprep.subr.bf16.mxu0 0
    %763 = vmatpush1.bf16.msra.mxu0 %v699
    %764 = vmatprep.mubr.bf16.mxu0 %v512
    %765 = vmatmul.mubr.bf16.gmra.mrb[0].mxu0 %v530
    %v766 = vpop.f32.mrb[0].mxu0
    %v767 = vadd.f32 %v57, %v766
    %v768 = vpop.f32.mrb[0].mxu0
    %v769 = vpop.f32.mrb[0].mxu0
    %v770 = vadd.f32 %v58, %v769
    %v771 = vpop.f32.mrb[0].mxu0
    %772 = vmatprep.mubr.bf16.mxu0 %v513
    %773 = vmatmul.mubr.bf16.gmra.mrb[0].mxu0 %v531
    %v774 = vpop.f32.mrb[0].mxu0
    %v775 = vadd.f32 %v59, %v774
    %v776 = vpop.f32.mrb[0].mxu0
    %v777 = vpop.f32.mrb[0].mxu0
    %v778 = vadd.f32 %v60, %v777
    %v779 = vpop.f32.mrb[0].mxu0
    %780 = vdwg.mxu0
    %781 = vmatprep.subr.bf16.mxu0 0
    %782 = vmatpush1.bf16.msra.mxu0 %v700
    %783 = vmatprep.subr.bf16.mxu0 0
    %784 = vmatpush1.bf16.msra.mxu0 %v701
    %785 = vmatprep.subr.bf16.mxu0 0
    %786 = vmatpush1.bf16.msra.mxu0 %v702
    %787 = vmatprep.subr.bf16.mxu0 0
    %788 = vmatpush1.bf16.msra.mxu0 %v703
    %789 = vmatprep.subr.bf16.mxu0 0
    %790 = vmatpush1.bf16.msra.mxu0 %v704
    %791 = vmatprep.subr.bf16.mxu0 0
    %792 = vmatpush1.bf16.msra.mxu0 %v705
    %793 = vmatprep.subr.bf16.mxu0 0
    %794 = vmatpush1.bf16.msra.mxu0 %v706
    %795 = vmatprep.subr.bf16.mxu0 0
    %796 = vmatpush1.bf16.msra.mxu0 %v707
    %797 = vmatprep.subr.bf16.mxu0 0
    %798 = vmatpush1.bf16.msra.mxu0 0
    %799 = vmatprep.subr.bf16.mxu0 0
    %800 = vmatpush1.bf16.msra.mxu0 0
    %801 = vmatprep.subr.bf16.mxu0 0
    %802 = vmatpush1.bf16.msra.mxu0 0
    %803 = vmatprep.subr.bf16.mxu0 0
    %804 = vmatpush1.bf16.msra.mxu0 0
    %805 = vmatprep.subr.bf16.mxu0 0
    %806 = vmatpush1.bf16.msra.mxu0 0
    %807 = vmatprep.subr.bf16.mxu0 0
    %808 = vmatpush1.bf16.msra.mxu0 0
    %809 = vmatprep.subr.bf16.mxu0 0
    %810 = vmatpush1.bf16.msra.mxu0 0
    %811 = vmatprep.subr.bf16.mxu0 0
    %812 = vmatpush1.bf16.msra.mxu0 0
    %813 = vmatprep.mubr.bf16.mxu0 0
    %814 = vmatmul.mubr.bf16.gmra.mrb[0].mxu0 %v538
    %v815 = vpop.f32.mrb[0].mxu0
    %v816 = vadd.f32 %v767, %v815
    %v817 = vpop.f32.mrb[0].mxu0
    %v818 = vpop.f32.mrb[0].mxu0
    %v819 = vadd.f32 %v770, %v818
    %v820 = vpop.f32.mrb[0].mxu0
    %821 = vmatprep.mubr.bf16.mxu0 0
    %822 = vmatmul.mubr.bf16.gmra.mrb[0].mxu0 %v539
    %v823 = vpop.f32.mrb[0].mxu0
    %v824 = vadd.f32 %v775, %v823
    %v825 = vpop.f32.mrb[0].mxu0
    %v826 = vpop.f32.mrb[0].mxu0
    %v827 = vadd.f32 %v778, %v826
    %v828 = vpop.f32.mrb[0].mxu0
    %829 = vdwg.mxu0
    %830 = vst [vmem:[#allocation8] sm:$0xff] %v816
    %831 = vst [vmem:[#allocation8 + $0x8] sm:$0xff] %v819
    %832 = vst [vmem:[#allocation8 + $0x10] sm:$0xff] %v824
    %833 = vst [vmem:[#allocation8 + $0x18] sm:$0xff] %v827
    // Predicated region
    $region26: #{preact_block.1} parent=1 // pred_check
      _
    $region27: #{preact_block.1} parent=1 // pred_check_branch
      %835 = sbr.rel (0) target = $region29
    $region28: #{preact_block.1} parent=1 // pred_region
      %s837 = ssub.s32 512, 512
      %838 = vsyncadd [#allocation4], %s837
      %s839 = sshll.u32 [#allocation8], 4
      %s840 = int_to_ptr.vmem [resolvable:$true] %s839
      %845 = dma.vmem_to_hbm [thread:$0]  %s840, 512, %s3, [#allocation4], 128, 128, 8
    $region29: #{preact_block.1} parent=1 // pred_fallthru
      _
    // Predicated region
    $region30: #{preact_block.1} parent=1 // pred_check
      _
    $region31: #{preact_block.1} parent=1 // pred_check_branch
      %847 = sbr.rel (0) target = $region33
    $region32: #{preact_block.1} parent=1 // pred_region
      %848 = dma.done [#allocation4], 512
    $region33: #{preact_block.1} parent=1 // pred_fallthru
      _
    %849 = vsyncpa [#allocation3], 1
    %850 = vsyncpa [#allocation6], 1
    %851 = vsyncpa [#allocation4], 1

</llo_original>
